<compile_context>
chip_gen: v6e
topology: v6e:2x2x1
jax: 0.10.0
libtpu: 0.0.40
codegen_flags: <defaults>
</compile_context>

<pallas_src>
import functools

import jax
import jax.numpy as jnp
from jax import lax
from jax.experimental import pallas as pl
from jax.experimental.pallas import tpu as pltpu

_LANES = 128


def _pick_tile_n(n, c, itemsize):
    """Largest row tile (multiple of 8, <= 512) whose f32 working set stays
    ~2 MiB per block: keeps double-buffered inputs + temporaries well under
    the scoped VMEM limit on all generations (incl. v7x's smaller VMEM)."""
    work_bytes = c * max(int(itemsize), 4)          # per-row f32 working set
    budget = 2 * 1024 * 1024
    tile = max(8, min(512, budget // max(1, work_bytes)))
    tile = max(8, (tile // 8) * 8)                  # sublane multiple
    n_pad = ((n + 7) // 8) * 8
    return min(tile, n_pad)


def _focal_loss_kernel(logits_ref, tgt_ref, wt_ref, out_ref, *, gamma, tile_n, n_rows):
    i = pl.program_id(0)

    logits = logits_ref[...].astype(jnp.float32)     # (TILE_N, C), f32 math in-kernel
    tgt = tgt_ref[...]                               # (TILE_N, 1) int32
    wt = wt_ref[...]                                 # (TILE_N, 1) f32 = weight[target]

    tn, c = logits.shape

    # Rows past n_rows (last partial tile reads OOB/garbage) must not contribute.
    row_ids = i * tile_n + lax.broadcasted_iota(jnp.int32, (tn, 1), 0)
    valid = row_ids < n_rows

    # Numerically stable logsumexp over the class (lane) axis.
    m = jnp.max(logits, axis=-1, keepdims=True)
    lse = jnp.log(jnp.sum(jnp.exp(logits - m), axis=-1, keepdims=True)) + m

    # logits[target] via masked select + one lane sum (no float one-hot tensor).
    class_ids = lax.broadcasted_iota(jnp.int32, (tn, c), 1)
    tgt_logit = jnp.sum(
        jnp.where(class_ids == tgt, logits, 0.0), axis=-1, keepdims=True)

    ce = (lse - tgt_logit) * wt                      # weighted per-sample CE

    if gamma == 0.0:
        loss = ce                                    # (1 - p)**0 == 1
    else:
        p = jnp.exp(-ce)
        q = 1.0 - p
        gi = int(gamma)
        if float(gi) == gamma and 1 <= gi <= 4:      # unroll small integer gamma
            f = q
            for _ in range(gi - 1):
                f = f * q
        else:
            f = jnp.power(q, gamma)
        loss = f * ce

    partial = jnp.sum(jnp.where(valid, loss, 0.0))
    # Lane-dense partial-sum block; wrapper reads lane 0 of each tile.
    out_ref[...] = jnp.zeros_like(out_ref) + partial


def focal_loss_pallas(logits, target, weight=None, gamma=0.0, tile_n=None):
    """Forward of FocalLoss(weight, gamma)(logits, target).

    logits: (N, C) float (native dtype; cast to f32 inside the kernel)
    target: (N,) int
    weight: optional (C,) float per-class weights
    """
    n, c = logits.shape

    if weight is None:
        wt = jnp.ones((n,), jnp.float32)
    else:
        wt = jnp.asarray(weight, jnp.float32)[target]   # 4N-byte wrapper gather

    tgt2d = target.astype(jnp.int32).reshape(n, 1)
    wt2d = wt.reshape(n, 1)

    itemsize = jnp.dtype(logits.dtype).itemsize
    if tile_n is None:
        tile_n = _pick_tile_n(n, c, itemsize)
    tile_n = max(8, ((int(tile_n) + 7) // 8) * 8)       # enforce sublane multiple
    num_tiles = pl.cdiv(n, tile_n)

    kernel = functools.partial(
        _focal_loss_kernel, gamma=float(gamma), tile_n=tile_n, n_rows=n)

    cost = pl.CostEstimate(
        flops=8 * n * c,
        transcendentals=n * c + 2 * n,
        bytes_accessed=n * c * itemsize + 8 * n + num_tiles * _LANES * 4,
    )

    partials = pl.pallas_call(
        kernel,
        out_shape=jax.ShapeDtypeStruct((num_tiles, 1, _LANES), jnp.float32),
        grid=(num_tiles,),
        in_specs=[
            pl.BlockSpec((tile_n, c), lambda i: (i, 0)),
            pl.BlockSpec((tile_n, 1), lambda i: (i, 0)),
            pl.BlockSpec((tile_n, 1), lambda i: (i, 0)),
        ],
        out_specs=pl.BlockSpec((1, 1, _LANES), lambda i: (i, 0, 0)),
        compiler_params=pltpu.CompilerParams(
            dimension_semantics=("parallel",),
            vmem_limit_bytes=32 * 1024 * 1024,
        ),
        cost_estimate=cost,
    )(logits, tgt2d, wt2d)

    # Final mean, applied exactly once (in the wrapper).
    return jnp.sum(partials[:, 0, 0]) / n


def _reference(logits, target, weight, gamma):
    x = logits.astype(jnp.float32)
    lse = jax.nn.logsumexp(x, axis=-1)
    tgt_logit = jnp.take_along_axis(x, target[:, None], axis=-1)[:, 0]
    ce = lse - tgt_logit
    if weight is not None:
        ce = ce * jnp.asarray(weight, jnp.float32)[target]
    p = jnp.exp(-ce)
    return jnp.mean((1.0 - p) ** gamma * ce)


if __name__ == "__main__":
    key = jax.random.PRNGKey(0)
    k1, k2, k3, k4 = jax.random.split(key, 4)

    # Case 1: f32 logits, per-class weights, integer gamma, multi-tile grid.
    N, C = 24, 32
    gamma = 2.0
    logits = jax.random.normal(k1, (N, C), dtype=jnp.float32)
    target = jax.random.randint(k2, (N,), 0, C, dtype=jnp.int32)
    weight = jnp.linspace(0.5, 1.5, C, dtype=jnp.float32)
    out = jax.block_until_ready(
        focal_loss_pallas(logits, target, weight=weight, gamma=gamma, tile_n=8))
    ref = _reference(logits, target, weight, gamma)
    assert jnp.allclose(out, ref, rtol=1e-5, atol=1e-5), (out, ref)

    # Case 2: ragged batch (N not a multiple of the tile), no weights,
    # non-integer gamma, bf16 logits (native-dtype HBM read, f32 math in-kernel).
    N2, C2 = 13, 32
    logits2 = jax.random.normal(k3, (N2, C2), dtype=jnp.float32).astype(jnp.bfloat16)
    target2 = jax.random.randint(k4, (N2,), 0, C2, dtype=jnp.int32)
    out2 = jax.block_until_ready(
        focal_loss_pallas(logits2, target2, weight=None, gamma=1.5))
    ref2 = _reference(logits2, target2, None, 1.5)
    assert jnp.allclose(out2, ref2, rtol=1e-4, atol=1e-4), (out2, ref2)

    # Case 3: gamma == 0 reduces to the plain (mean of weighted) cross-entropy.
    out3 = jax.block_until_ready(
        focal_loss_pallas(logits, target, weight=weight, gamma=0.0))
    ref3 = _reference(logits, target, weight, 0.0)
    assert jnp.allclose(out3, ref3, rtol=1e-5, atol=1e-5), (out3, ref3)

    print("KERNEL_OK")
</pallas_src>

<mosaic_0001>
module attributes {stable_mosaic.version = 11 : i64} {
  func.func @_focal_loss_kernel(%arg0: i32, %arg1: memref<8x32xf32, #tpu.memory_space<vmem>>, %arg2: memref<8x1xi32, #tpu.memory_space<vmem>>, %arg3: memref<8x1xf32, #tpu.memory_space<vmem>>, %arg4: memref<1x1x128xf32, #tpu.memory_space<vmem>>) attributes {dimension_semantics = [#tpu.dimension_semantics<parallel>], iteration_bounds = array<i64: 3>, scalar_prefetch = 0 : i64, scratch_operands = 0 : i64, tpu.core_type = #tpu.core_type<tc>, window_params = [{transform_indices = @transform_0, window_bounds = array<i64: 8, 32>}, {transform_indices = @transform_1, window_bounds = array<i64: 8, 1>}, {transform_indices = @transform_2, window_bounds = array<i64: 8, 1>}, {transform_indices = @transform_3, window_bounds = array<i64: 1, 1, 128>}]} {
    %c0 = arith.constant 0 : index
    %c0_0 = arith.constant 0 : index
    %0 = vector.load %arg1[%c0, %c0_0] : memref<8x32xf32, #tpu.memory_space<vmem>>, vector<8x32xf32>
    %c0_1 = arith.constant 0 : index
    %c0_2 = arith.constant 0 : index
    %1 = vector.load %arg2[%c0_1, %c0_2] : memref<8x1xi32, #tpu.memory_space<vmem>>, vector<8x1xi32>
    %c0_3 = arith.constant 0 : index
    %c0_4 = arith.constant 0 : index
    %2 = vector.load %arg3[%c0_3, %c0_4] : memref<8x1xf32, #tpu.memory_space<vmem>>, vector<8x1xf32>
    %c8_i32 = arith.constant 8 : i32
    %3 = arith.muli %arg0, %c8_i32 : i32
    %4 = tpu.iota {dimensions = array<i32: 0>} : vector<8x1xi32>
    %5 = vector.broadcast %3 : i32 to vector<8x1xi32>
    %6 = arith.addi %5, %4 : vector<8x1xi32>
    %c24_i32 = arith.constant 24 : i32
    %7 = vector.broadcast %c24_i32 : i32 to vector<8x1xi32>
    %8 = arith.cmpi slt, %6, %7 : vector<8x1xi32>
    %cst = arith.constant dense<0xFF800000> : vector<8xf32>
    %9 = vector.multi_reduction <maximumf>, %0, %cst [1] : vector<8x32xf32> to vector<8xf32>
    %10 = vector.shape_cast %9 : vector<8xf32> to vector<8x1xf32>
    %11 = vector.broadcast %10 : vector<8x1xf32> to vector<8x32xf32>
    %12 = arith.subf %0, %11 : vector<8x32xf32>
    %13 = math.exp %12 : vector<8x32xf32>
    %cst_5 = arith.constant dense<0.000000e+00> : vector<8xf32>
    %14 = vector.multi_reduction <add>, %13, %cst_5 [1] : vector<8x32xf32> to vector<8xf32>
    %15 = vector.shape_cast %14 : vector<8xf32> to vector<8x1xf32>
    %16 = math.log %15 : vector<8x1xf32>
    %17 = arith.addf %16, %10 : vector<8x1xf32>
    %18 = tpu.iota {dimensions = array<i32: 1>} : vector<8x32xi32>
    %19 = vector.broadcast %1 : vector<8x1xi32> to vector<8x32xi32>
    %20 = arith.cmpi eq, %18, %19 : vector<8x32xi32>
    %cst_6 = arith.constant 0.000000e+00 : f32
    %21 = vector.broadcast %cst_6 : f32 to vector<8x32xf32>
    %22 = arith.select %20, %0, %21 : vector<8x32xi1>, vector<8x32xf32>
    %cst_7 = arith.constant dense<0.000000e+00> : vector<8xf32>
    %23 = vector.multi_reduction <add>, %22, %cst_7 [1] : vector<8x32xf32> to vector<8xf32>
    %24 = vector.shape_cast %23 : vector<8xf32> to vector<8x1xf32>
    %25 = arith.subf %17, %24 : vector<8x1xf32>
    %26 = arith.mulf %25, %2 : vector<8x1xf32>
    %cst_8 = arith.constant 0.000000e+00 : f32
    %27 = vector.broadcast %cst_8 : f32 to vector<8x1xf32>
    %28 = arith.subf %27, %26 : vector<8x1xf32>
    %29 = math.exp %28 : vector<8x1xf32>
    %cst_9 = arith.constant 1.000000e+00 : f32
    %30 = vector.broadcast %cst_9 : f32 to vector<8x1xf32>
    %31 = arith.subf %30, %29 : vector<8x1xf32>
    %32 = arith.mulf %31, %31 : vector<8x1xf32>
    %33 = arith.mulf %32, %26 : vector<8x1xf32>
    %cst_10 = arith.constant 0.000000e+00 : f32
    %34 = vector.broadcast %cst_10 : f32 to vector<8x1xf32>
    %35 = arith.select %8, %33, %34 : vector<8x1xi1>, vector<8x1xf32>
    %36 = vector.shape_cast %35 : vector<8x1xf32> to vector<1x8x1xf32>
    %cst_11 = arith.constant dense<0.000000e+00> : vector<1xf32>
    %37 = vector.multi_reduction <add>, %36, %cst_11 [1, 2] : vector<1x8x1xf32> to vector<1xf32>
    %38 = vector.shape_cast %37 : vector<1xf32> to vector<1x1x1xf32>
    %39 = vector.extract %38[0, 0, 0] : f32 from vector<1x1x1xf32>
    %cst_12 = arith.constant 0.000000e+00 : f32
    %40 = vector.broadcast %cst_12 : f32 to vector<1x1x128xf32>
    %41 = vector.broadcast %39 : f32 to vector<1x1x128xf32>
    %42 = arith.addf %40, %41 : vector<1x1x128xf32>
    %c0_13 = arith.constant 0 : index
    %c0_14 = arith.constant 0 : index
    %c0_15 = arith.constant 0 : index
    %43 = vector.load %arg4[%c0_13, %c0_14, %c0_15] : memref<1x1x128xf32, #tpu.memory_space<vmem>>, vector<1x1x128xf32>
    tpu.vector_store %arg4[%c0_13, %c0_14, %c0_15], %42 {strides = array<i32>} : memref<1x1x128xf32, #tpu.memory_space<vmem>>, vector<1x1x128xf32>,
    return
  }
  func.func @transform_0(%arg0: i32) -> (i32, i32) {
    %c0_i32 = arith.constant 0 : i32
    %c0_i32_0 = arith.constant 0 : i32
    return %arg0, %c0_i32 : i32, i32
  }
  func.func @transform_1(%arg0: i32) -> (i32, i32) {
    %c0_i32 = arith.constant 0 : i32
    %c0_i32_0 = arith.constant 0 : i32
    return %arg0, %c0_i32 : i32, i32
  }
  func.func @transform_2(%arg0: i32) -> (i32, i32) {
    %c0_i32 = arith.constant 0 : i32
    %c0_i32_0 = arith.constant 0 : i32
    return %arg0, %c0_i32 : i32, i32
  }
  func.func @transform_3(%arg0: i32) -> (i32, i32, i32) {
    %c0_i32 = arith.constant 0 : i32
    %c0_i32_0 = arith.constant 0 : i32
    %c0_i32_1 = arith.constant 0 : i32
    return %arg0, %c0_i32, %c0_i32_0 : i32, i32, i32
  }
}

</mosaic_0001>

<llo_original>
// kernel: tpu_custom_call.1
$region0: #{tpu_custom_call.1}
  #allocation0 [shape = 'u32[]', space=smem, size = 0x4, offset = 0x4, fixed_abs, tag = 'smem constant byte address 0x4 - core index']
  #allocation1 [shape = 'u32[144,128]{1,0:T(1,128)}', space=vmem, size = 0x12000, scoped, tag = 'internal scratch']
  %s0 = inlined_call_operand.vmem [shape: f32[24,32], index: 0, kind: input, shape index: {}]
  %s1 = inlined_call_operand.vmem [shape: s32[24,1], index: 1, kind: input, shape index: {}]
  %s2 = inlined_call_operand.vmem [shape: f32[24,1], index: 2, kind: input, shape index: {}]
  %s3 = inlined_call_operand.hbm [shape: f32[3,1,128], index: 3, kind: output, shape index: {}]
  %s4 = sld [smem:[#allocation0]]
  $region45: #{tpu_custom_call.1} parent=0
    _
  %s6 = ssub.s32 1, %s4
  %s7 = scalar_select 0, %s6, %s4
  $region1: #{tpu_custom_call.1} parent=0
    #allocation2 [shape = 'u8[1024]{0}', space=vmem, size = 0x400, scoped, tag = 'output window, operand 0']
    #allocation3 [shape = 's32[2]{0}', space=sflag, size = 0x8, scoped, tag = 'scoped memory for tpu_custom_call.1']
    %8 = vsyncpa [#allocation3], 0
    %s9 = scalar_lea.sflag [#allocation3], 1
    %10 = vsyncpa %s9, 0
    loop: start=0, step=1, limit=5
    $region2: #{tpu_custom_call.1} parent=1 // loop_pre_header
      _
    $region3: #{tpu_custom_call.1} parent=1 // loop_header
      %s12 = sphi 0, %s16
      %p13 = scmp.ge.s32.totalorder %s12, 5
      %s22 = sphi 0, %s24
      %s25 = sphi 0, %s22
      %s26 = sphi 0, %s25
      %s42 = sphi 0, %s26
      %s48 = sphi 0, %s50
      %s51 = sphi 0, %s48
      %s52 = sphi 0, %s51
      %s68 = sphi 0, %s52
      %s74 = sphi 0, %s76
      %s77 = sphi 0, %s74
      %s78 = sphi 0, %s77
      %s94 = sphi 0, %s78
      %s100 = sphi 0, %s102
      %s103 = sphi 0, %s100
      %s104 = sphi 0, %s103
      %s120 = sphi 0, %s104
    $region4: #{tpu_custom_call.1} parent=1 // loop_header_branch
      %15 = sbr.rel (%p13) target = $region8
    $region5: #{tpu_custom_call.1} parent=1 // loop_body
      %s17 = ssub.s32 %s12, 1
      %s18 = ssub.s32 %s12, 2
      %s19 = sadd.s32 %s12, 1
      %s20 = ssub.s32 %s12, %s19
      %p21 = scmp.eq.s32.totalorder %s20, 0
      %s23 = sadd.s32 %s22, 1
      %s24 = scalar_select %p21, %s22, %s23
      %p27 = pneg %p21
      %p28 = scmp.eq.s32.totalorder %s12, 2
      %p29 = por %p27, %p28
      %p30 = scmp.ne.s32.totalorder %s22, %s25
      %p31 = scmp.eq.s32.totalorder %s12, 0
      %p32 = por %p30, %p31
      %p33 = scmp.ne.s32.totalorder %s22, %s25
      %p34 = scmp.eq.s32.totalorder %s17, 2
      %p35 = por %p33, %p34
      %p36 = scmp.ne.s32.totalorder %s25, %s26
      %p37 = scmp.eq.s32.totalorder %s17, 0
      %p38 = por %p36, %p37
      %p39 = scmp.ne.s32.totalorder %s25, %s26
      %p40 = scmp.eq.s32.totalorder %s18, 2
      %p41 = por %p39, %p40
      %p43 = scmp.ne.s32.totalorder %s26, %s42
      %p44 = scmp.eq.s32.totalorder %s18, 0
      %p45 = por %p43, %p44
      %s46 = ssub.s32 %s12, %s19
      %p47 = scmp.eq.s32.totalorder %s46, 0
      %s49 = sadd.s32 %s48, 1
      %s50 = scalar_select %p47, %s48, %s49
      %p53 = pneg %p47
      %p54 = scmp.eq.s32.totalorder %s12, 2
      %p55 = por %p53, %p54
      %p56 = scmp.ne.s32.totalorder %s48, %s51
      %p57 = scmp.eq.s32.totalorder %s12, 0
      %p58 = por %p56, %p57
      %p59 = scmp.ne.s32.totalorder %s48, %s51
      %p60 = scmp.eq.s32.totalorder %s17, 2
      %p61 = por %p59, %p60
      %p62 = scmp.ne.s32.totalorder %s51, %s52
      %p63 = scmp.eq.s32.totalorder %s17, 0
      %p64 = por %p62, %p63
      %p65 = scmp.ne.s32.totalorder %s51, %s52
      %p66 = scmp.eq.s32.totalorder %s18, 2
      %p67 = por %p65, %p66
      %p69 = scmp.ne.s32.totalorder %s52, %s68
      %p70 = scmp.eq.s32.totalorder %s18, 0
      %p71 = por %p69, %p70
      %s72 = ssub.s32 %s12, %s19
      %p73 = scmp.eq.s32.totalorder %s72, 0
      %s75 = sadd.s32 %s74, 1
      %s76 = scalar_select %p73, %s74, %s75
      %p79 = pneg %p73
      %p80 = scmp.eq.s32.totalorder %s12, 2
      %p81 = por %p79, %p80
      %p82 = scmp.ne.s32.totalorder %s74, %s77
      %p83 = scmp.eq.s32.totalorder %s12, 0
      %p84 = por %p82, %p83
      %p85 = scmp.ne.s32.totalorder %s74, %s77
      %p86 = scmp.eq.s32.totalorder %s17, 2
      %p87 = por %p85, %p86
      %p88 = scmp.ne.s32.totalorder %s77, %s78
      %p89 = scmp.eq.s32.totalorder %s17, 0
      %p90 = por %p88, %p89
      %p91 = scmp.ne.s32.totalorder %s77, %s78
      %p92 = scmp.eq.s32.totalorder %s18, 2
      %p93 = por %p91, %p92
      %p95 = scmp.ne.s32.totalorder %s78, %s94
      %p96 = scmp.eq.s32.totalorder %s18, 0
      %p97 = por %p95, %p96
      %s98 = ssub.s32 %s12, %s19
      %p99 = scmp.eq.s32.totalorder %s98, 0
      %s101 = sadd.s32 %s100, 1
      %s102 = scalar_select %p99, %s100, %s101
      %p105 = pneg %p99
      %p106 = scmp.eq.s32.totalorder %s12, 2
      %p107 = por %p105, %p106
      %p108 = scmp.ne.s32.totalorder %s100, %s103
      %p109 = scmp.eq.s32.totalorder %s12, 0
      %p110 = por %p108, %p109
      %p111 = scmp.ne.s32.totalorder %s100, %s103
      %p112 = scmp.eq.s32.totalorder %s17, 2
      %p113 = por %p111, %p112
      %p114 = scmp.ne.s32.totalorder %s103, %s104
      %p115 = scmp.eq.s32.totalorder %s17, 0
      %p116 = por %p114, %p115
      %p117 = scmp.ne.s32.totalorder %s103, %s104
      %p118 = scmp.eq.s32.totalorder %s18, 2
      %p119 = por %p117, %p118
      %p121 = scmp.ne.s32.totalorder %s104, %s120
      %p122 = scmp.eq.s32.totalorder %s18, 0
      %p123 = por %p121, %p122
      %p124 = scmp.le.s32.totalorder 1, %s12
      %p125 = scmp.lt.s32.totalorder %s12, 4
      %p126 = pnand %p124, %p125
      %p127 = pneg %p126
      // Predicated region
      $region9: #{tpu_custom_call.1} parent=5 // pred_check
        _
      $region10: #{tpu_custom_call.1} parent=5 // pred_check_branch
        %129 = sbr.rel (%p126) target = $region12
      $region11: #{tpu_custom_call.1} parent=5 // pred_region
        %s130 = ssub.s32 %s12, 1
      $region12: #{tpu_custom_call.1} parent=5 // pred_fallthru
        _
      %p131 = scmp.lt.s32.totalorder %s12, 3
      // Predicated region
      $region13: #{tpu_custom_call.1} parent=5 // pred_check
        %p132 = pneg %p131
      $region14: #{tpu_custom_call.1} parent=5 // pred_check_branch
        %134 = sbr.rel (%p132) target = $region16
      $region15: #{tpu_custom_call.1} parent=5 // pred_region
        // Predicated region
        $region17: #{tpu_custom_call.1} parent=15 // pred_check
          %p135 = pneg %p32
        $region18: #{tpu_custom_call.1} parent=15 // pred_check_branch
          %137 = sbr.rel (%p135) target = $region20
        $region19: #{tpu_custom_call.1} parent=15 // pred_region
          %p138 = scmp.lt.s32.totalorder %s12, 2
          %s139 = scalar_select %p138, %s12, 2
          %s140 = smul.addr %s139, 8
          %s141 = scalar_lea.vmem %s0, %s140
        $region20: #{tpu_custom_call.1} parent=15 // pred_fallthru
          _
        // Predicated region
        $region21: #{tpu_custom_call.1} parent=15 // pred_check
          %p142 = pneg %p58
        $region22: #{tpu_custom_call.1} parent=15 // pred_check_branch
          %144 = sbr.rel (%p142) target = $region24
        $region23: #{tpu_custom_call.1} parent=15 // pred_region
          %p145 = scmp.lt.s32.totalorder %s12, 2
          %s146 = scalar_select %p145, %s12, 2
          %s147 = smul.addr %s146, 8
          %s148 = scalar_lea.vmem %s1, %s147
        $region24: #{tpu_custom_call.1} parent=15 // pred_fallthru
          _
        // Predicated region
        $region25: #{tpu_custom_call.1} parent=15 // pred_check
          %p149 = pneg %p84
        $region26: #{tpu_custom_call.1} parent=15 // pred_check_branch
          %151 = sbr.rel (%p149) target = $region28
        $region27: #{tpu_custom_call.1} parent=15 // pred_region
          %p152 = scmp.lt.s32.totalorder %s12, 2
          %s153 = scalar_select %p152, %s12, 2
          %s154 = smul.addr %s153, 8
          %s155 = scalar_lea.vmem %s2, %s154
        $region28: #{tpu_custom_call.1} parent=15 // pred_fallthru
          _
      $region16: #{tpu_custom_call.1} parent=5 // pred_fallthru
        _
      %p156 = scmp.le.s32.totalorder 1, %s12
      %p157 = scmp.lt.s32.totalorder %s12, 4
      %p158 = pnand %p156, %p157
      %p159 = pneg %p158
      // Predicated region
      $region29: #{tpu_custom_call.1} parent=5 // pred_check
        _
      $region30: #{tpu_custom_call.1} parent=5 // pred_check_branch
        %161 = sbr.rel (%p158) target = $region32
      $region31: #{tpu_custom_call.1} parent=5 // pred_region
        %s162 = ssub.s32 %s12, 1
        %p163 = scmp.lt.s32.totalorder %s17, 2
        %s164 = scalar_select %p163, %s17, 2
        %s165 = smul.addr %s164, 8
        %s166 = scalar_lea.vmem %s0, %s165
        %p167 = pneg %p38
        %p168 = pneg %p35
        %p169 = scmp.lt.s32.totalorder %s17, 2
        %s170 = scalar_select %p169, %s17, 2
        %s171 = smul.addr %s170, 8
        %s172 = scalar_lea.vmem %s1, %s171
        %p173 = pneg %p64
        %p174 = pneg %p61
        %p175 = scmp.lt.s32.totalorder %s17, 2
        %s176 = scalar_select %p175, %s17, 2
        %s177 = smul.addr %s176, 8
        %s178 = scalar_lea.vmem %s2, %s177
        %p179 = pneg %p90
        %p180 = pneg %p87
        %p181 = pneg %p116
        %p182 = pneg %p113
        %s183 = sand.u32 %s103, 1
        %s184 = scalar_lea.sflag [#allocation3], %s183
        %s185 = sand.u32 %s103, 1
        %s186 = scalar_lea.vmem [#allocation2], %s185
        %p187 = scmp.lt.s32.totalorder %s17, 2
        %s188 = scalar_select %p187, %s17, 2
        %s189 = smul.addr %s188, 8
        %s190 = scalar_lea.vmem %s0, %s189
        %p191 = scmp.lt.s32.totalorder %s17, 2
        %s192 = scalar_select %p191, %s17, 2
        %s193 = smul.addr %s192, 8
        %s194 = scalar_lea.vmem %s1, %s193
        %p195 = scmp.lt.s32.totalorder %s17, 2
        %s196 = scalar_select %p195, %s17, 2
        %s197 = smul.addr %s196, 8
        %s198 = scalar_lea.vmem %s2, %s197
        %v199 = vld [vmem:[%s190] sm:$0xff]
        %v200 = vld [vmem:[%s194] sm:$0xff]
        %v201 = vld [vmem:[%s198] sm:$0xff]
        %s202 = smul.u32 %s17, 8
        %v203 = vlaneseq
        %v204 = vshrl.u32 %v203, 7
        %v205 = vstv %s202
        %v206 = vadd.s32 %v205, %v204
        %vm207 = vcmp.lt.s32.totalorder %v206, 24
        %vm208 = vcmask 261120
        %v209 = vsel %vm208, %v199, -inf
        %210 = vmax.xlane.f32.xlu0 %v209
        %v211 = vpop.xlane.xlu0 %210
        %v212 = vsub.f32 %v199, %v211
        %v213 = vmul.f32 %v212, 1.442695
        %v214 = vpow.pop %v213
        %v215 = vsel %vm208, %v214, 0.0
        %216 = vadd.xlane.f32.xlu0 %v215
        %v217 = vpop.xlane.xlu0 %216
        %v218 = vlog2.pop %v217
        %v219 = vmul.f32 %v218, 0.6931472
        %v220 = vadd.f32 %v219, %v211
        %v221 = vlaneseq
        %v222 = vand.u32 %v221, 127
        %223 = vset.pattern.permute.xlu0 0
        %224 = vperm.xlu0 %223, %v200
        %v225 = vpop.permute.xlu0 %224
        %vm226 = vcmp.eq.s32.totalorder %v222, %v225
        %v227 = vsel %vm226, %v199, 0.0
        %v228 = vsel %vm208, %v227, 0.0
        %229 = vadd.xlane.f32.xlu0 %v228
        %v230 = vpop.xlane.xlu0 %229
        %v231 = vsub.f32 %v220, %v230
        %v232 = vmul.f32 %v231, %v201
        %v233 = vsub.f32 0.0, %v232
        %v234 = vmul.f32 %v233, 1.442695
        %v235 = vpow.pop %v234
        %v236 = vsub.f32 1.0, %v235
        %v237 = vmul.f32 %v236, %v236
        %v238 = vmul.f32 %v237, %v232
        %v239 = vsel %vm207, %v238, 0.0
        %vm240 = vcmask 7168
        %v241 = vsel %vm240, %v239, 0.0
        %242 = vadd.xlane.f32.xlu0 %v241
        %v243 = vpop.xlane.xlu0 %242
        %v244 = vrot.slane %v243, 4
        %v245 = vadd.f32 %v243, %v244
        %v246 = vrot.slane %v245, 2
        %v247 = vadd.f32 %v245, %v246
        %v248 = vrot.slane %v247, 1
        %v249 = vadd.f32 %v247, %v248
        %s250 = vtos %v249
        %v251 = vstv %s250
        %v252 = vadd.f32 %v251, 0.0
        %253 = vst [vmem:[%s186] sm:$0x1] %v252
        %s254 = sand.u32 %s103, 1
        %s255 = scalar_lea.sflag [#allocation3], %s254
        %s256 = sand.u32 %s103, 1
        %s257 = scalar_lea.vmem [#allocation2], %s256
        // Predicated region
        $region33: #{tpu_custom_call.1} parent=31 // pred_check
          %p258 = pneg %p113
        $region34: #{tpu_custom_call.1} parent=31 // pred_check_branch
          %260 = sbr.rel (%p258) target = $region36
        $region35: #{tpu_custom_call.1} parent=31 // pred_region
          %s262 = ssub.s32 16, 16
          %263 = vsyncadd %s255, %s262
          %s264 = smul.addr %s17, 16
          %s265 = scalar_lea.hbm %s3, %s264
          %s267 = sshll.u32 %s257, 4
          %s268 = int_to_ptr.vmem [resolvable:$true] %s267
          %270 = dma.vmem_to_hbm [thread:$0]  %s268, 16, %s265, %s255
        $region36: #{tpu_custom_call.1} parent=31 // pred_fallthru
          _
      $region32: #{tpu_custom_call.1} parent=5 // pred_fallthru
        _
      %p271 = scmp.le.s32.totalorder 2, %s12
      // Predicated region
      $region37: #{tpu_custom_call.1} parent=5 // pred_check
        %p272 = pneg %p271
      $region38: #{tpu_custom_call.1} parent=5 // pred_check_branch
        %274 = sbr.rel (%p272) target = $region40
      $region39: #{tpu_custom_call.1} parent=5 // pred_region
        %s275 = ssub.s32 %s12, 2
        // Predicated region
        $region41: #{tpu_custom_call.1} parent=39 // pred_check
          %p276 = pneg %p119
        $region42: #{tpu_custom_call.1} parent=39 // pred_check_branch
          %278 = sbr.rel (%p276) target = $region44
        $region43: #{tpu_custom_call.1} parent=39 // pred_region
          %s279 = sand.u32 %s104, 1
          %s280 = scalar_lea.sflag [#allocation3], %s279
          %s281 = sand.u32 %s104, 1
          %s282 = scalar_lea.vmem [#allocation2], %s281
          %283 = dma.done %s280, 16
        $region44: #{tpu_custom_call.1} parent=39 // pred_fallthru
          _
      $region40: #{tpu_custom_call.1} parent=5 // pred_fallthru
        _
    $region6: #{tpu_custom_call.1} parent=1 // loop_footer
      %s16 = sadd.s32 1, %s12
    $region7: #{tpu_custom_call.1} parent=1 // loop_footer_branch
      %11 = sbr.rel target = $region3
    $region8: #{tpu_custom_call.1} parent=1 // loop_exit
      _
    %284 = vsyncpa [#allocation3], 1
    %s285 = scalar_lea.sflag [#allocation3], 1
    %286 = vsyncpa %s285, 1

</llo_original>
